<compile_context>
chip_gen: v5e
topology: v5e:2x2
jax: 0.10.0
libtpu: 0.0.40
codegen_flags: <defaults>
</compile_context>

<pallas_src>
import functools

import jax
import jax.numpy as jnp
from jax.experimental import pallas as pl
from jax.experimental.pallas import tpu as pltpu


def _layernorm_kernel(x_ref, a_ref, b_ref, o_ref, *, eps: float, features: int,
                      low_precision_affine: bool):
    # x_ref: (row_tile, features)   a_ref/b_ref: (1, features)
    x = x_ref[...]
    xf = x.astype(jnp.float32)
    n = jnp.float32(features)

    # Two-pass moments: mean first, then squared deviations. The second
    # elementwise sweep is free filler on an HBM-bound op and avoids the
    # cancellation of the single-pass E[x^2] - mean^2 formulation.
    mean = jnp.sum(xf, axis=-1, keepdims=True) / n
    cen = xf - mean
    # Unbiased variance (N-1 divisor) to match torch.Tensor.std() default.
    # NOTE: features == 1 divides by zero -> NaN, same as torch (documented).
    var = jnp.sum(cen * cen, axis=-1, keepdims=True) / jnp.float32(features - 1)
    denom = jnp.sqrt(var) + jnp.float32(eps)

    # EUP approximate reciprocal (separate VLIW slot, ~free) + one Newton
    # refinement on the tiny (rows, 1) column to recover ~full f32 accuracy.
    inv = pl.reciprocal(denom, approx=True)
    inv = inv * (2.0 - denom * inv)

    if low_precision_affine:
        # bf16/f16 elementwise path on the big (rows, features) tile: halves
        # VALU work and vreg traffic (v7x), statistics above remain f32.
        cdt = x.dtype
        y = (x - mean.astype(cdt)) * inv.astype(cdt) * a_ref[...].astype(cdt) \
            + b_ref[...].astype(cdt)
    else:
        a = a_ref[...].astype(jnp.float32)
        b = b_ref[...].astype(jnp.float32)
        # (rows,1) inverse first, then the (1,features) scale: cheap broadcasts.
        y = cen * inv * a + b
    o_ref[...] = y.astype(o_ref.dtype)


def _round_up(x: int, m: int) -> int:
    return ((x + m - 1) // m) * m


def _cdiv(a: int, b: int) -> int:
    return -(-a // b)


def _tpu_topology() -> tuple[int, int]:
    """Best-effort (tensorcores_per_chip, vmem_capacity_bytes).

    Falls back to the most conservative assumption (1 TensorCore, 64 MiB VMEM,
    i.e. a single v7x core) if the query is unavailable / fields unknown.
    """
    num_cores, vmem_bytes = 1, 64 << 20
    try:
        info = pltpu.get_tpu_info()
        vmem_bytes = int(getattr(info, "vmem_capacity_bytes", vmem_bytes) or vmem_bytes)
        for name in ("num_cores", "cores_per_chip", "num_tensorcores",
                     "tensorcores_per_chip", "tensorcore_count"):
            v = getattr(info, name, None)
            if v:
                num_cores = int(v)
                break
    except Exception:
        pass
    return max(1, num_cores), max(16 << 20, int(vmem_bytes))


def _pick_row_tile(rows: int, features: int, itemsize: int, *,
                   num_cores: int, vmem_bytes: int,
                   tile_target_bytes: int = 4 << 20) -> int:
    """Pick the per-grid-step row count.

    - sublane alignment follows dtype packing (8 f32 / 16 bf16 / 32 int8)
    - input tile sized toward ~4 MiB so the ~0.35us fixed per-step overhead is
      negligible and the HBM roofline is reached
    - total VMEM residency (2-in + 2-out double-buffers + ~3 fp32 in-kernel
      temporaries) kept under ~40% of physical VMEM (fits v7x's 64 MiB)
    - ONLY on multi-TensorCore chips, additionally cap the tile so the parallel
      row axis splits into a balanced (multiple-of-num_cores) number of steps.
    """
    sub = max(8, 32 // max(itemsize, 1))            # packed sublane multiple
    rows_padded = _round_up(max(rows, 1), sub)

    per_row_io = 4 * features * itemsize            # 2 in + 2 out double-buffers
    per_row_f32 = 12 * features                     # ~3 fp32 temporaries in-kernel
    resid_budget = max(8 << 20, int(vmem_bytes * 0.40))

    cap_tile = tile_target_bytes // max(features * itemsize, 1)
    cap_resid = resid_budget // max(per_row_io + per_row_f32, 1)
    tile = max(sub, min(cap_tile, cap_resid, rows_padded))

    if num_cores > 1 and rows_padded > sub:
        steps = max(num_cores, _cdiv(rows_padded, tile))
        steps = _round_up(steps, num_cores)         # balanced across cores
        tile = min(tile, max(sub, _round_up(_cdiv(rows_padded, steps), sub)))

    return max(sub, (tile // sub) * sub)


def layer_norm(x: jax.Array, a_2: jax.Array, b_2: jax.Array, eps: float = 1e-6,
               row_tile: int | None = None) -> jax.Array:
    """LayerNorm over the last axis of x with torch.Tensor.std (unbiased) semantics.

    NOTE: features == 1 is degenerate (NaN output), exactly like the PyTorch module.
    """
    orig_shape = x.shape
    features = orig_shape[-1]
    rows = 1
    for d in orig_shape[:-1]:
        rows *= d

    # TODO(synk): for tiny feature dims (e.g. 32) pack k = 128//features rows per
    # vreg lane row (wrapper reshape + segmented in-kernel reductions) to avoid
    # masked partial-lane stores; current layout is lane-dense only for
    # features that are multiples of 128 (typical transformer d_model).
    x2 = x.reshape(rows, features)
    a2 = a_2.reshape(1, features)
    b2 = b_2.reshape(1, features)

    itemsize = jnp.dtype(x.dtype).itemsize
    num_cores, vmem_bytes = _tpu_topology()
    if row_tile is None:
        row_tile = _pick_row_tile(rows, features, itemsize,
                                  num_cores=num_cores, vmem_bytes=vmem_bytes)

    grid = (pl.cdiv(rows, row_tile),)  # partial last block handled by Pallas; no pad copy

    # True VMEM residency: double-buffered I/O tiles + ~3 fp32 in-kernel temps
    # + resident a/b + margin; clamp to 90% of physical VMEM.
    resid = (row_tile * features * (4 * itemsize + 12)
             + 4 * features * max(itemsize, 4) + (2 << 20))
    vmem_limit = int(min(max(resid, 16 << 20), int(vmem_bytes * 0.9)))

    low_precision_affine = bool(jnp.issubdtype(x.dtype, jnp.floating) and itemsize < 4)

    kernel = functools.partial(_layernorm_kernel, eps=eps, features=features,
                               low_precision_affine=low_precision_affine)

    out = pl.pallas_call(
        kernel,
        out_shape=jax.ShapeDtypeStruct((rows, features), x.dtype),
        grid_spec=pltpu.PrefetchScalarGridSpec(
            num_scalar_prefetch=0,
            grid=grid,
            in_specs=[
                pl.BlockSpec((row_tile, features), lambda i: (i, 0)),
                pl.BlockSpec((1, features), lambda i: (0, 0)),
                pl.BlockSpec((1, features), lambda i: (0, 0)),
            ],
            out_specs=pl.BlockSpec((row_tile, features), lambda i: (i, 0)),
        ),
        compiler_params=pltpu.CompilerParams(
            dimension_semantics=("parallel",),
            vmem_limit_bytes=vmem_limit,
        ),
    )(x2, a2, b2)

    return out.reshape(orig_shape)


if __name__ == "__main__":
    # Deterministic parameters matching nn.Parameter(torch.ones/zeros(features)).
    batch, seq_len, features = 2, 8, 32
    a_2 = jnp.ones((features,), dtype=jnp.float32)
    b_2 = jnp.zeros((features,), dtype=jnp.float32)
    eps = 1e-6

    key = jax.random.PRNGKey(0)
    x = jax.random.normal(key, (batch, seq_len, features), dtype=jnp.float32)

    y = layer_norm(x, a_2, b_2, eps)
    y = jax.block_until_ready(y)

    # Pure-JAX reference with identical (PyTorch) semantics.
    mean = jnp.mean(x, axis=-1, keepdims=True)
    std = jnp.sqrt(jnp.sum((x - mean) ** 2, axis=-1, keepdims=True) / (features - 1))
    y_ref = a_2 * (x - mean) / (std + eps) + b_2
    assert jnp.allclose(y, y_ref, atol=1e-4, rtol=1e-4), "mismatch vs reference"

    print("KERNEL_OK")
</pallas_src>

<mosaic_0001>
module attributes {stable_mosaic.version = 11 : i64} {
  func.func @_layernorm_kernel(%arg0: i32, %arg1: memref<16x32xf32, #tpu.memory_space<vmem>>, %arg2: memref<1x32xf32, #tpu.memory_space<vmem>>, %arg3: memref<1x32xf32, #tpu.memory_space<vmem>>, %arg4: memref<16x32xf32, #tpu.memory_space<vmem>>) attributes {dimension_semantics = [#tpu.dimension_semantics<parallel>], iteration_bounds = array<i64: 1>, scalar_prefetch = 0 : i64, scratch_operands = 0 : i64, tpu.core_type = #tpu.core_type<tc>, window_params = [{transform_indices = @transform_0, window_bounds = array<i64: 16, 32>}, {pipeline_mode = #tpu.pipeline_mode<synchronous>, transform_indices = @transform_1, window_bounds = array<i64: 1, 32>}, {pipeline_mode = #tpu.pipeline_mode<synchronous>, transform_indices = @transform_2, window_bounds = array<i64: 1, 32>}, {transform_indices = @transform_3, window_bounds = array<i64: 16, 32>}]} {
    %c0 = arith.constant 0 : index
    %c0_0 = arith.constant 0 : index
    %0 = vector.load %arg1[%c0, %c0_0] : memref<16x32xf32, #tpu.memory_space<vmem>>, vector<16x32xf32>
    %cst = arith.constant dense<0.000000e+00> : vector<16xf32>
    %1 = vector.multi_reduction <add>, %0, %cst [1] : vector<16x32xf32> to vector<16xf32>
    %2 = vector.shape_cast %1 : vector<16xf32> to vector<16x1xf32>
    %cst_1 = arith.constant 3.200000e+01 : f32
    %3 = vector.broadcast %cst_1 : f32 to vector<16x1xf32>
    %4 = arith.divf %2, %3 : vector<16x1xf32>
    %5 = vector.broadcast %4 : vector<16x1xf32> to vector<16x32xf32>
    %6 = arith.subf %0, %5 : vector<16x32xf32>
    %7 = arith.mulf %6, %6 : vector<16x32xf32>
    %cst_2 = arith.constant dense<0.000000e+00> : vector<16xf32>
    %8 = vector.multi_reduction <add>, %7, %cst_2 [1] : vector<16x32xf32> to vector<16xf32>
    %9 = vector.shape_cast %8 : vector<16xf32> to vector<16x1xf32>
    %cst_3 = arith.constant 3.100000e+01 : f32
    %10 = vector.broadcast %cst_3 : f32 to vector<16x1xf32>
    %11 = arith.divf %9, %10 : vector<16x1xf32>
    %12 = math.sqrt %11 : vector<16x1xf32>
    %cst_4 = arith.constant 9.99999997E-7 : f32
    %13 = vector.broadcast %cst_4 : f32 to vector<16x1xf32>
    %14 = arith.addf %12, %13 : vector<16x1xf32>
    %15 = tpu.reciprocal %14 {approx = true} : vector<16x1xf32> -> vector<16x1xf32>
    %16 = arith.mulf %14, %15 : vector<16x1xf32>
    %cst_5 = arith.constant 2.000000e+00 : f32
    %17 = vector.broadcast %cst_5 : f32 to vector<16x1xf32>
    %18 = arith.subf %17, %16 : vector<16x1xf32>
    %19 = arith.mulf %15, %18 : vector<16x1xf32>
    %c0_6 = arith.constant 0 : index
    %c0_7 = arith.constant 0 : index
    %20 = vector.load %arg2[%c0_6, %c0_7] : memref<1x32xf32, #tpu.memory_space<vmem>>, vector<1x32xf32>
    %c0_8 = arith.constant 0 : index
    %c0_9 = arith.constant 0 : index
    %21 = vector.load %arg3[%c0_8, %c0_9] : memref<1x32xf32, #tpu.memory_space<vmem>>, vector<1x32xf32>
    %22 = vector.broadcast %19 : vector<16x1xf32> to vector<16x32xf32>
    %23 = arith.mulf %6, %22 : vector<16x32xf32>
    %24 = vector.broadcast %20 : vector<1x32xf32> to vector<16x32xf32>
    %25 = arith.mulf %23, %24 : vector<16x32xf32>
    %26 = vector.broadcast %21 : vector<1x32xf32> to vector<16x32xf32>
    %27 = arith.addf %25, %26 : vector<16x32xf32>
    %c0_10 = arith.constant 0 : index
    %c0_11 = arith.constant 0 : index
    %28 = vector.load %arg4[%c0_10, %c0_11] : memref<16x32xf32, #tpu.memory_space<vmem>>, vector<16x32xf32>
    tpu.vector_store %arg4[%c0_10, %c0_11], %27 {strides = array<i32>} : memref<16x32xf32, #tpu.memory_space<vmem>>, vector<16x32xf32>,
    return
  }
  func.func @transform_0(%arg0: i32) -> (i32, i32) {
    %c0_i32 = arith.constant 0 : i32
    %c0_i32_0 = arith.constant 0 : i32
    return %arg0, %c0_i32 : i32, i32
  }
  func.func @transform_1(%arg0: i32) -> (i32, i32) {
    %c0_i32 = arith.constant 0 : i32
    %c0_i32_0 = arith.constant 0 : i32
    %c0_i32_1 = arith.constant 0 : i32
    return %c0_i32, %c0_i32_0 : i32, i32
  }
  func.func @transform_2(%arg0: i32) -> (i32, i32) {
    %c0_i32 = arith.constant 0 : i32
    %c0_i32_0 = arith.constant 0 : i32
    %c0_i32_1 = arith.constant 0 : i32
    return %c0_i32, %c0_i32_0 : i32, i32
  }
  func.func @transform_3(%arg0: i32) -> (i32, i32) {
    %c0_i32 = arith.constant 0 : i32
    %c0_i32_0 = arith.constant 0 : i32
    return %arg0, %c0_i32 : i32, i32
  }
}

</mosaic_0001>

<llo_original>
// kernel: tpu_custom_call.1
$region0: #{tpu_custom_call.1}
  #allocation0 [shape = 'u32[]', space=smem, size = 0x4, offset = 0x4, fixed_abs, tag = 'smem constant byte address 0x4 - core index']
  #allocation1 [shape = 'u32[72,128]{1,0:T(1,128)}', space=vmem, size = 0x9000, scoped, tag = 'internal scratch']
  %s0 = inlined_call_operand.hbm [shape: f32[16,32], index: 0, kind: input, shape index: {}]
  %s1 = inlined_call_operand.hbm [shape: f32[1,32], index: 1, kind: input, shape index: {}]
  %s2 = inlined_call_operand.vmem [shape: f32[1,32], index: 2, kind: input, shape index: {}]
  %s3 = inlined_call_operand.hbm [shape: f32[16,32], index: 3, kind: output, shape index: {}]
  %s4 = sld [smem:[#allocation0]]
  $region30: #{tpu_custom_call.1} parent=0
    _
  %s6 = ssub.s32 1, %s4
  %s7 = scalar_select 0, %s6, %s4
  $region1: #{tpu_custom_call.1} parent=0
    #allocation2 [shape = 'u8[8192]{0}', space=vmem, size = 0x2000, scoped, tag = 'input window, operand 0, single buffered']
    #allocation3 [shape = 's32[1]{0}', space=sflag, size = 0x4, scoped, tag = 'scoped memory for tpu_custom_call.1']
    #allocation4 [shape = 's32[1]{0}', space=sflag, size = 0x4, scoped, tag = 'scoped memory for tpu_custom_call.1']
    #allocation5 [shape = 'u8[512]{0}', space=vmem, size = 0x400, scoped, tag = 'input window, operand 1, single buffered']
    #allocation6 [shape = 's32[1]{0}', space=sflag, size = 0x4, scoped, tag = 'scoped memory for tpu_custom_call.1']
    #allocation7 [shape = 'u8[8192]{0}', space=vmem, size = 0x2000, scoped, tag = 'output window, operand 0, single buffered']
    %8 = vsyncpa [#allocation3], 0
    %9 = vsyncpa [#allocation6], 0
    %10 = vsyncpa [#allocation4], 0
    // Predicated region
    $region2: #{tpu_custom_call.1} parent=1 // pred_check
      _
    $region3: #{tpu_custom_call.1} parent=1 // pred_check_branch
      %12 = sbr.rel (0) target = $region5
    $region4: #{tpu_custom_call.1} parent=1 // pred_region
      %14 = vsyncadd [#allocation3], 0
      %s15 = sshll.u32 %s0, 4
      %s16 = int_to_ptr.hbm [resolvable:$true] %s15
      %s17 = sshll.u32 [#allocation2], 4
      %s18 = int_to_ptr.vmem [resolvable:$true] %s17
      %23 = dma.hbm_to_vmem [thread:$0]  %s16, 256, %s18, [#allocation3], 128, 128, 8
    $region5: #{tpu_custom_call.1} parent=1 // pred_fallthru
      _
    // Predicated region
    $region6: #{tpu_custom_call.1} parent=1 // pred_check
      _
    $region7: #{tpu_custom_call.1} parent=1 // pred_check_branch
      %25 = sbr.rel (0) target = $region9
    $region8: #{tpu_custom_call.1} parent=1 // pred_region
      %27 = vsyncadd [#allocation6], 0
      %s29 = sshll.u32 %s1, 4
      %s30 = int_to_ptr.hbm [resolvable:$true] %s29
      %s31 = sshll.u32 [#allocation5], 4
      %s32 = int_to_ptr.vmem [resolvable:$true] %s31
      %34 = dma.hbm_to_vmem [thread:$0]  %s30, 16, %s32, [#allocation6]
    $region9: #{tpu_custom_call.1} parent=1 // pred_fallthru
      _
    // Predicated region
    $region10: #{tpu_custom_call.1} parent=1 // pred_check
      _
    $region11: #{tpu_custom_call.1} parent=1 // pred_check_branch
      %36 = sbr.rel (0) target = $region13
    $region12: #{tpu_custom_call.1} parent=1 // pred_region
      _
    $region13: #{tpu_custom_call.1} parent=1 // pred_fallthru
      _
    // Predicated region
    $region14: #{tpu_custom_call.1} parent=1 // pred_check
      _
    $region15: #{tpu_custom_call.1} parent=1 // pred_check_branch
      %38 = sbr.rel (0) target = $region17
    $region16: #{tpu_custom_call.1} parent=1 // pred_region
      %40 = dma.done [#allocation3], 256
    $region17: #{tpu_custom_call.1} parent=1 // pred_fallthru
      _
    // Predicated region
    $region18: #{tpu_custom_call.1} parent=1 // pred_check
      _
    $region19: #{tpu_custom_call.1} parent=1 // pred_check_branch
      %42 = sbr.rel (0) target = $region21
    $region20: #{tpu_custom_call.1} parent=1 // pred_region
      %44 = dma.done [#allocation6], 16
    $region21: #{tpu_custom_call.1} parent=1 // pred_fallthru
      _
    %v45 = vld [vmem:[#allocation2] sm:$0xff]
    %v46 = vld [vmem:[#allocation2 + $0x8] sm:$0xff]
    %vm47 = vcmask 261120
    %v48 = vsel %vm47, %v45, 0.0
    %49 = vadd.xlane.f32.xlu0 %v48
    %v50 = vpop.xlane.xlu0 %49
    %v51 = vsel %vm47, %v46, 0.0
    %52 = vadd.xlane.f32.xlu0 %v51
    %v53 = vpop.xlane.xlu0 %52
    %v54 = vrcp.pop 32.0
    %v55 = vmul.f32 32.0, %v54
    %v56 = vsub.f32 1.0, %v55
    %v57 = vmul.f32 %v54, %v56
    %v58 = vadd.f32 %v54, %v57
    %vm59 = vweird.f32 %v54
    %v60 = vsel %vm59, %v54, %v58
    %v61 = vmul.f32 %v50, %v60
    %v62 = vmul.f32 %v53, %v60
    %v63 = vsub.f32 %v45, %v61
    %v64 = vsub.f32 %v46, %v62
    %v65 = vmul.f32 %v63, %v63
    %v66 = vmul.f32 %v64, %v64
    %v67 = vsel %vm47, %v65, 0.0
    %68 = vadd.xlane.f32.xlu0 %v67
    %v69 = vpop.xlane.xlu0 %68
    %v70 = vsel %vm47, %v66, 0.0
    %71 = vadd.xlane.f32.xlu0 %v70
    %v72 = vpop.xlane.xlu0 %71
    %v73 = vrcp.pop 31.0
    %v74 = vmul.f32 31.0, %v73
    %v75 = vsub.f32 1.0, %v74
    %v76 = vmul.f32 %v73, %v75
    %v77 = vadd.f32 %v73, %v76
    %vm78 = vweird.f32 %v73
    %v79 = vsel %vm78, %v73, %v77
    %v80 = vmul.f32 %v69, %v79
    %v81 = vmul.f32 %v72, %v79
    %v82 = vrsqrt.pop %v80
    %v83 = vmul.f32 %v82, %v80
    %v84 = vmul.f32 %v83, %v82
    %v85 = vmul.f32 0.5, %v84
    %v86 = vsub.f32 1.5, %v85
    %v87 = vmul.f32 %v82, %v86
    %v88 = vmul.f32 %v80, %v87
    %vm89 = vcmp.eq.f32.partialorder %v80, inf
    %v90 = vsel %vm89, %v80, %v88
    %vm91 = vcmp.eq.f32.partialorder %v80, 0.0
    %v92 = vand.u32 %v80, 2147483648
    %v93 = vsel %vm91, %v92, %v90
    %v94 = vrsqrt.pop %v81
    %v95 = vmul.f32 %v94, %v81
    %v96 = vmul.f32 %v95, %v94
    %v97 = vmul.f32 0.5, %v96
    %v98 = vsub.f32 1.5, %v97
    %v99 = vmul.f32 %v94, %v98
    %v100 = vmul.f32 %v81, %v99
    %vm101 = vcmp.eq.f32.partialorder %v81, inf
    %v102 = vsel %vm101, %v81, %v100
    %vm103 = vcmp.eq.f32.partialorder %v81, 0.0
    %v104 = vand.u32 %v81, 2147483648
    %v105 = vsel %vm103, %v104, %v102
    %v106 = vadd.f32 %v93, 1e-06
    %v107 = vadd.f32 %v105, 1e-06
    %v108 = vrcp.pop %v106
    %v109 = vrcp.pop %v107
    %v110 = vmul.f32 %v106, %v108
    %v111 = vmul.f32 %v107, %v109
    %v112 = vsub.f32 2.0, %v110
    %v113 = vsub.f32 2.0, %v111
    %v114 = vmul.f32 %v108, %v112
    %v115 = vmul.f32 %v109, %v113
    %v116 = vld [vmem:[#allocation5] sm:$0x1]
    %v117 = vld [vmem:[%s2] sm:$0x1]
    %v118 = vmul.f32 %v63, %v114
    %v119 = vmul.f32 %v64, %v115
    %v121 = vperm.slane %v116, 0
    %v123 = vmul.f32 %v118, %v121
    %v124 = vmul.f32 %v119, %v121
    %v126 = vperm.slane %v117, 0
    %v128 = vadd.f32 %v123, %v126
    %v129 = vadd.f32 %v124, %v126
    %130 = vst.msk [vmem:[#allocation7] sm:$0xff] %vm47, %v128
    %131 = vst.msk [vmem:[#allocation7 + $0x8] sm:$0xff] %vm47, %v129
    // Predicated region
    $region22: #{tpu_custom_call.1} parent=1 // pred_check
      _
    $region23: #{tpu_custom_call.1} parent=1 // pred_check_branch
      %133 = sbr.rel (0) target = $region25
    $region24: #{tpu_custom_call.1} parent=1 // pred_region
      %135 = vsyncadd [#allocation4], 0
      %s136 = sshll.u32 [#allocation7], 4
      %s137 = int_to_ptr.vmem [resolvable:$true] %s136
      %s138 = sshll.u32 %s3, 4
      %s139 = int_to_ptr.hbm [resolvable:$true] %s138
      %144 = dma.vmem_to_hbm [thread:$0]  %s137, 256, %s139, [#allocation4], 128, 128, 8
    $region25: #{tpu_custom_call.1} parent=1 // pred_fallthru
      _
    // Predicated region
    $region26: #{tpu_custom_call.1} parent=1 // pred_check
      _
    $region27: #{tpu_custom_call.1} parent=1 // pred_check_branch
      %146 = sbr.rel (0) target = $region29
    $region28: #{tpu_custom_call.1} parent=1 // pred_region
      %148 = dma.done [#allocation4], 256
    $region29: #{tpu_custom_call.1} parent=1 // pred_fallthru
      _
    %149 = vsyncpa [#allocation3], 1
    %150 = vsyncpa [#allocation6], 1
    %151 = vsyncpa [#allocation4], 1

</llo_original>
